<compile_context>
chip_gen: v7x
topology: tpu7x:2x2x1
jax: 0.10.0
libtpu: 0.0.40
codegen_flags: <defaults>
</compile_context>

<pallas_src>
import functools
from typing import NamedTuple

import jax
import jax.numpy as jnp
from jax.experimental import pallas as pl
from jax.experimental.pallas import tpu as pltpu


# ----------------------------------------------------------------------------- helpers
def _round_up(x, m):
    return (x + m - 1) // m * m


def _cdiv(a, b):
    return (a + b - 1) // b


def _vmem_capacity_bytes():
    """Physical VMEM capacity (per TensorCore); conservative fallback = 64 MiB (v7x)."""
    try:
        info = pltpu.get_tpu_info()
        cap = getattr(info, "vmem_capacity_bytes", None)
        if cap:
            return int(cap)
    except Exception:
        pass
    return 64 * 1024 * 1024


class FFNConfig(NamedTuple):
    d_in: int
    d_hid: int
    d_out: int
    d_in_p: int
    d_hid_p: int
    d_out_p: int
    TH: int
    block_b: int
    vmem_usable: int


def _weight_footprint(cfg: FFNConfig) -> int:
    # Conservatively assume double-buffered weight/bias tiles (bf16 weights, f32 biases).
    return 2 * (cfg.d_in_p * cfg.TH * 2 + cfg.TH * cfg.d_out_p * 2
                + cfg.TH * 4 + cfg.d_out_p * 4)


def _act_footprint(TB: int, cfg: FFNConfig) -> int:
    x_t = 2 * TB * cfg.d_in_p * 2        # x tile, bf16, double-buffered
    o_t = 2 * TB * cfg.d_out_p * 4       # out tile, f32, double-buffered
    h_t = TB * cfg.TH * 6                # (TB, TH) f32 intermediate + bf16 cast copy
    return x_t + o_t + h_t


def _vmem_fits(cfg: FFNConfig, TB: int) -> bool:
    return _weight_footprint(cfg) + _act_footprint(TB, cfg) <= cfg.vmem_usable


# ----------------------------------------------------------------------------- planning
def plan_ffn(input_dim, hidden_dim, output_dim, *, block_b=1024, block_h=4096):
    """Pick padded dims, hidden tiling and VMEM budget once per (shape, device)."""
    d_in_p = _round_up(input_dim, 128)
    d_out_p = _round_up(output_dim, 128)
    d_hid_128 = _round_up(hidden_dim, 128)

    vmem_usable = int(_vmem_capacity_bytes() * 0.85)   # headroom for compiler scratch/sems

    # Nominal batch tile only for the residency-fit estimate.
    tb_nom = _round_up(min(block_b, 512), 8)

    def fits(TH):
        tmp = FFNConfig(input_dim, hidden_dim, output_dim,
                        d_in_p, _round_up(hidden_dim, TH), d_out_p,
                        TH, block_b, vmem_usable)
        return _vmem_fits(tmp, tb_nom)

    th_cap = _round_up(min(block_h, d_hid_128), 128)
    if th_cap >= d_hid_128 and fits(d_hid_128):
        # Full hidden residency: weights stay in VMEM across all batch tiles,
        # no reduction axis, b2 added directly in the single step.
        TH = d_hid_128
    else:
        TH = min(th_cap, d_hid_128)
        if TH > 256:
            TH = (TH // 256) * 256       # 256-wide MXU occupancy (v6e/v7x)
        while TH > 128 and not fits(TH):
            TH = max(128, _round_up(TH // 2, 128))

    d_hid_p = _round_up(hidden_dim, TH)
    return FFNConfig(input_dim, hidden_dim, output_dim,
                     d_in_p, d_hid_p, d_out_p, TH, block_b, vmem_usable)


def prepare_ffn_params(cfg: FFNConfig, w1, b1, w2, b2):
    """Pad + cast weights ONCE (hoisted out of the per-call path)."""
    w1_p = jnp.pad(w1, ((0, cfg.d_in_p - cfg.d_in),
                        (0, cfg.d_hid_p - cfg.d_hid))).astype(jnp.bfloat16)
    w2_p = jnp.pad(w2, ((0, cfg.d_hid_p - cfg.d_hid),
                        (0, cfg.d_out_p - cfg.d_out))).astype(jnp.bfloat16)
    b1_p = jnp.pad(b1, (0, cfg.d_hid_p - cfg.d_hid)).reshape(1, cfg.d_hid_p).astype(jnp.float32)
    b2_p = jnp.pad(b2, (0, cfg.d_out_p - cfg.d_out)).reshape(1, cfg.d_out_p).astype(jnp.float32)
    return w1_p, b1_p, w2_p, b2_p


# ----------------------------------------------------------------------------- kernels
def _ffn_kernel_resident(x_ref, w1_ref, b1_ref, w2_ref, b2_ref, o_ref):
    """Single hidden tile: whole FFN in one step, weights VMEM-resident."""
    h = jnp.dot(x_ref[...], w1_ref[...], preferred_element_type=jnp.float32)
    h = jnp.maximum(h + b1_ref[...], 0.0)
    o_ref[...] = (
        jnp.dot(h.astype(w2_ref.dtype), w2_ref[...],
                preferred_element_type=jnp.float32)
        + b2_ref[...]
    ).astype(o_ref.dtype)


def _ffn_kernel_reduce(x_ref, w1_ref, b1_ref, w2_ref, b2_ref, o_ref):
    """Hidden-split path: accumulate partial fc2 directly into the resident o_ref block."""
    hk = pl.program_id(1)

    h = jnp.dot(x_ref[...], w1_ref[...], preferred_element_type=jnp.float32)
    h = jnp.maximum(h + b1_ref[...], 0.0)
    part = jnp.dot(h.astype(w2_ref.dtype), w2_ref[...],
                   preferred_element_type=jnp.float32)

    @pl.when(hk == 0)
    def _():
        o_ref[...] = part

    @pl.when(hk > 0)
    def _():
        o_ref[...] = o_ref[...] + part

    @pl.when(hk == pl.num_programs(1) - 1)
    def _():
        o_ref[...] = o_ref[...] + b2_ref[...]


# ----------------------------------------------------------------------------- forward
def _pick_tb(B, cfg: FFNConfig) -> int:
    B8 = _round_up(B, 8)
    if B8 <= cfg.block_b:
        TB = B8
    else:
        TB = _round_up(cfg.block_b, 256) if cfg.block_b >= 256 else _round_up(cfg.block_b, 8)
    # Megacore / v7x: keep >= 2 batch tiles when there is enough batch to split.
    if B8 >= 512 and _round_up(B8, TB) // TB < 2:
        TB = max(256, _round_up(_cdiv(B8, 2), 256))
    # Shrink until resident weights + activation tiles fit the VMEM budget.
    while TB > 8 and not _vmem_fits(cfg, TB):
        TB = max(8, _round_up(TB // 2, 8))
    return TB


@functools.partial(jax.jit, static_argnames=("cfg",))
def ffn_forward(x, w1_p, b1_p, w2_p, b2_p, cfg: FFNConfig):
    """relu(x @ w1 + b1) @ w2 + b2 with pre-padded/pre-cast weights."""
    B, d_in = x.shape
    assert d_in == cfg.d_in

    TB = _pick_tb(B, cfg)
    B_p = _round_up(B, TB)
    nbt = B_p // TB
    nht = cfg.d_hid_p // cfg.TH

    x_p = jnp.pad(x, ((0, B_p - B), (0, cfg.d_in_p - d_in))).astype(jnp.bfloat16)

    kernel = _ffn_kernel_resident if nht == 1 else _ffn_kernel_reduce

    needed = _weight_footprint(cfg) + _act_footprint(TB, cfg)
    vmem_limit = int(min(max(needed * 5 // 4, 32 * 1024 * 1024), cfg.vmem_usable))

    out_p = pl.pallas_call(
        kernel,
        out_shape=jax.ShapeDtypeStruct((B_p, cfg.d_out_p), jnp.float32),
        grid_spec=pltpu.PrefetchScalarGridSpec(
            num_scalar_prefetch=0,
            grid=(nbt, nht),
            in_specs=[
                pl.BlockSpec((TB, cfg.d_in_p), lambda i, k: (i, 0)),        # x tile
                pl.BlockSpec((cfg.d_in_p, cfg.TH), lambda i, k: (0, k)),    # w1 slice (resident when nht==1)
                pl.BlockSpec((1, cfg.TH), lambda i, k: (0, k)),             # b1 slice
                pl.BlockSpec((cfg.TH, cfg.d_out_p), lambda i, k: (k, 0)),   # w2 slice
                pl.BlockSpec((1, cfg.d_out_p), lambda i, k: (0, 0)),        # b2
            ],
            out_specs=pl.BlockSpec((TB, cfg.d_out_p), lambda i, k: (i, 0)),
        ),
        compiler_params=pltpu.CompilerParams(
            dimension_semantics=("parallel", "arbitrary"),
            vmem_limit_bytes=vmem_limit,
        ),
    )(x_p, w1_p, b1_p, w2_p, b2_p)

    return out_p[:B, :cfg.d_out]


# ----------------------------------------------------------------------------- init / test
def init_ffn_params(key, input_dim, hidden_dim, output_dim):
    """Deterministic init matching nn.Linear shapes (stored pre-transposed)."""
    k1, k2, k3, k4 = jax.random.split(key, 4)
    bound1 = 1.0 / (input_dim ** 0.5)
    w1 = jax.random.uniform(k1, (input_dim, hidden_dim), jnp.float32,
                            minval=-bound1, maxval=bound1)
    b1 = jax.random.uniform(k2, (hidden_dim,), jnp.float32,
                            minval=-bound1, maxval=bound1)
    bound2 = 1.0 / (hidden_dim ** 0.5)
    w2 = jax.random.uniform(k3, (hidden_dim, output_dim), jnp.float32,
                            minval=-bound2, maxval=bound2)
    b2 = jax.random.uniform(k4, (output_dim,), jnp.float32,
                            minval=-bound2, maxval=bound2)
    return w1, b1, w2, b2


def _ref_forward(x, w1, b1, w2, b2):
    """Pure-JAX reference with matching bf16-input / f32-accumulate semantics."""
    xb, w1b, w2b = x.astype(jnp.bfloat16), w1.astype(jnp.bfloat16), w2.astype(jnp.bfloat16)
    h = jnp.maximum(jnp.dot(xb, w1b, preferred_element_type=jnp.float32) + b1, 0.0)
    return jnp.dot(h.astype(jnp.bfloat16), w2b, preferred_element_type=jnp.float32) + b2


if __name__ == "__main__":
    # TODO(synk): numerics intentionally use bf16 MXU inputs with f32 accumulation,
    # so results match a strict fp32 torch FFN only to ~1e-2 relative.
    key = jax.random.PRNGKey(0)
    kx, kp = jax.random.split(key)

    # --- test 1: small shapes, weight-resident (single hidden tile) path -------
    input_dim, hidden_dim, output_dim = 32, 64, 16
    batch = 8
    x = jax.random.normal(kx, (batch, input_dim), dtype=jnp.float32)
    w1, b1, w2, b2 = init_ffn_params(kp, input_dim, hidden_dim, output_dim)

    cfg = plan_ffn(input_dim, hidden_dim, output_dim)
    params = prepare_ffn_params(cfg, w1, b1, w2, b2)
    out = jax.block_until_ready(ffn_forward(x, *params, cfg=cfg))

    ref = _ref_forward(x, w1, b1, w2, b2)
    assert out.shape == (batch, output_dim)
    assert jnp.allclose(out, ref, atol=2e-3, rtol=2e-3), \
        f"max abs err {jnp.max(jnp.abs(out - ref))}"

    # --- test 2: force a hidden split to exercise the reduction-kernel path ----
    hidden_dim2 = 512
    w1b_, b1b_, w2b_, b2b_ = init_ffn_params(kp, input_dim, hidden_dim2, output_dim)
    cfg2 = plan_ffn(input_dim, hidden_dim2, output_dim, block_h=128)
    params2 = prepare_ffn_params(cfg2, w1b_, b1b_, w2b_, b2b_)
    out2 = jax.block_until_ready(ffn_forward(x, *params2, cfg=cfg2))

    ref2 = _ref_forward(x, w1b_, b1b_, w2b_, b2b_)
    assert out2.shape == (batch, output_dim)
    assert jnp.allclose(out2, ref2, atol=2e-3, rtol=2e-3), \
        f"max abs err {jnp.max(jnp.abs(out2 - ref2))}"

    print("KERNEL_OK")
</pallas_src>

<mosaic_0001>
module attributes {stable_mosaic.version = 11 : i64} {
  func.func @_ffn_kernel_resident(%arg0: i32, %arg1: i32, %arg2: memref<8x128xbf16, #tpu.memory_space<vmem>>, %arg3: memref<128x128xbf16, #tpu.memory_space<vmem>>, %arg4: memref<1x128xf32, #tpu.memory_space<vmem>>, %arg5: memref<128x128xbf16, #tpu.memory_space<vmem>>, %arg6: memref<1x128xf32, #tpu.memory_space<vmem>>, %arg7: memref<8x128xf32, #tpu.memory_space<vmem>>) attributes {dimension_semantics = [#tpu.dimension_semantics<parallel>, #tpu.dimension_semantics<arbitrary>], iteration_bounds = array<i64: 1, 1>, scalar_prefetch = 0 : i64, scratch_operands = 0 : i64, tpu.core_type = #tpu.core_type<tc>, window_params = [{transform_indices = @transform_0, window_bounds = array<i64: 8, 128>}, {transform_indices = @transform_1, window_bounds = array<i64: 128, 128>}, {transform_indices = @transform_2, window_bounds = array<i64: 1, 128>}, {transform_indices = @transform_3, window_bounds = array<i64: 128, 128>}, {pipeline_mode = #tpu.pipeline_mode<synchronous>, transform_indices = @transform_4, window_bounds = array<i64: 1, 128>}, {transform_indices = @transform_5, window_bounds = array<i64: 8, 128>}]} {
    %c0 = arith.constant 0 : index
    %c0_0 = arith.constant 0 : index
    %0 = vector.load %arg2[%c0, %c0_0] : memref<8x128xbf16, #tpu.memory_space<vmem>>, vector<8x128xbf16>
    %c0_1 = arith.constant 0 : index
    %c0_2 = arith.constant 0 : index
    %1 = vector.load %arg3[%c0_1, %c0_2] : memref<128x128xbf16, #tpu.memory_space<vmem>>, vector<128x128xbf16>
    %cst = arith.constant dense<0.000000e+00> : vector<8x128xf32>
    %2 = tpu.matmul %0, %1, %cst {dimension_numbers = #tpu.dot_dimension_numbers<[1], [0], [0], [1], [0, 0, 1, 1], [], []>} : vector<8x128xbf16>, vector<128x128xbf16>, vector<8x128xf32> -> vector<8x128xf32>
    %c0_3 = arith.constant 0 : index
    %c0_4 = arith.constant 0 : index
    %3 = vector.load %arg4[%c0_3, %c0_4] : memref<1x128xf32, #tpu.memory_space<vmem>>, vector<1x128xf32>
    %4 = vector.broadcast %3 : vector<1x128xf32> to vector<8x128xf32>
    %5 = arith.addf %2, %4 : vector<8x128xf32>
    %cst_5 = arith.constant 0.000000e+00 : f32
    %6 = vector.broadcast %cst_5 : f32 to vector<8x128xf32>
    %7 = arith.maximumf %5, %6 : vector<8x128xf32>
    %8 = arith.truncf %7 : vector<8x128xf32> to vector<8x128xbf16>
    %c0_6 = arith.constant 0 : index
    %c0_7 = arith.constant 0 : index
    %9 = vector.load %arg5[%c0_6, %c0_7] : memref<128x128xbf16, #tpu.memory_space<vmem>>, vector<128x128xbf16>
    %cst_8 = arith.constant dense<0.000000e+00> : vector<8x128xf32>
    %10 = tpu.matmul %8, %9, %cst_8 {dimension_numbers = #tpu.dot_dimension_numbers<[1], [0], [0], [1], [0, 0, 1, 1], [], []>} : vector<8x128xbf16>, vector<128x128xbf16>, vector<8x128xf32> -> vector<8x128xf32>
    %c0_9 = arith.constant 0 : index
    %c0_10 = arith.constant 0 : index
    %11 = vector.load %arg6[%c0_9, %c0_10] : memref<1x128xf32, #tpu.memory_space<vmem>>, vector<1x128xf32>
    %12 = vector.broadcast %11 : vector<1x128xf32> to vector<8x128xf32>
    %13 = arith.addf %10, %12 : vector<8x128xf32>
    %c0_11 = arith.constant 0 : index
    %c0_12 = arith.constant 0 : index
    %14 = vector.load %arg7[%c0_11, %c0_12] : memref<8x128xf32, #tpu.memory_space<vmem>>, vector<8x128xf32>
    tpu.vector_store %arg7[%c0_11, %c0_12], %13 {strides = array<i32>} : memref<8x128xf32, #tpu.memory_space<vmem>>, vector<8x128xf32>,
    return
  }
  func.func @transform_0(%arg0: i32, %arg1: i32) -> (i32, i32) {
    %c0_i32 = arith.constant 0 : i32
    %c0_i32_0 = arith.constant 0 : i32
    return %arg0, %c0_i32 : i32, i32
  }
  func.func @transform_1(%arg0: i32, %arg1: i32) -> (i32, i32) {
    %c0_i32 = arith.constant 0 : i32
    %c0_i32_0 = arith.constant 0 : i32
    return %c0_i32, %arg1 : i32, i32
  }
  func.func @transform_2(%arg0: i32, %arg1: i32) -> (i32, i32) {
    %c0_i32 = arith.constant 0 : i32
    %c0_i32_0 = arith.constant 0 : i32
    return %c0_i32, %arg1 : i32, i32
  }
  func.func @transform_3(%arg0: i32, %arg1: i32) -> (i32, i32) {
    %c0_i32 = arith.constant 0 : i32
    %c0_i32_0 = arith.constant 0 : i32
    return %arg1, %c0_i32 : i32, i32
  }
  func.func @transform_4(%arg0: i32, %arg1: i32) -> (i32, i32) {
    %c0_i32 = arith.constant 0 : i32
    %c0_i32_0 = arith.constant 0 : i32
    %c0_i32_1 = arith.constant 0 : i32
    return %c0_i32, %c0_i32_0 : i32, i32
  }
  func.func @transform_5(%arg0: i32, %arg1: i32) -> (i32, i32) {
    %c0_i32 = arith.constant 0 : i32
    %c0_i32_0 = arith.constant 0 : i32
    return %arg0, %c0_i32 : i32, i32
  }
}

</mosaic_0001>

<llo_original>
// kernel: ffn_forward.1
$region0: #{ffn_forward.1}
  #allocation0 [shape = 'u32[]', space=smem, size = 0x4, offset = 0x4, fixed_abs, tag = 'smem constant byte address 0x4 - core index']
  #allocation1 [shape = 'u32[144,128]{1,0:T(1,128)}', space=vmem, size = 0x12000, scoped, tag = 'internal scratch']
  %s0 = inlined_call_operand.vmem [shape: bf16[8,128], index: 0, kind: input, shape index: {}]
  %s1 = inlined_call_operand.hbm [shape: bf16[128,128], index: 1, kind: input, shape index: {}]
  %s2 = inlined_call_operand.vmem [shape: f32[1,128], index: 2, kind: input, shape index: {}]
  %s3 = inlined_call_operand.hbm [shape: bf16[128,128], index: 3, kind: input, shape index: {}]
  %s4 = inlined_call_operand.vmem [shape: f32[1,128], index: 4, kind: input, shape index: {}]
  %s5 = inlined_call_operand.hbm [shape: f32[8,128], index: 5, kind: output, shape index: {}]
  %s6 = sld [smem:[#allocation0]]
  $region38: #{ffn_forward.1} parent=0
    _
  %s8 = ssub.s32 1, %s6
  %s9 = scalar_select 0, %s8, %s6
  $region1: #{ffn_forward.1} parent=0
    #allocation2 [shape = 'u8[32768]{0}', space=vmem, size = 0x8000, scoped, tag = 'input window, operand 1, single buffered']
    #allocation3 [shape = 's32[1]{0}', space=sflag, size = 0x4, scoped, tag = 'scoped memory for ffn_forward.1']
    #allocation4 [shape = 's32[1]{0}', space=sflag, size = 0x4, scoped, tag = 'scoped memory for ffn_forward.1']
    #allocation5 [shape = 'u8[32768]{0}', space=vmem, size = 0x8000, scoped, tag = 'input window, operand 3, single buffered']
    #allocation6 [shape = 's32[1]{0}', space=sflag, size = 0x4, scoped, tag = 'scoped memory for ffn_forward.1']
    #allocation7 [shape = 'u8[4096]{0}', space=vmem, size = 0x1000, scoped, tag = 'output window, operand 0, single buffered']
    %10 = vsyncpa [#allocation3], 0
    %11 = vsyncpa [#allocation6], 0
    %12 = vsyncpa [#allocation4], 0
    // Predicated region
    $region2: #{ffn_forward.1} parent=1 // pred_check
      _
    $region3: #{ffn_forward.1} parent=1 // pred_check_branch
      %14 = sbr.rel (0) target = $region5
    $region4: #{ffn_forward.1} parent=1 // pred_region
      _
    $region5: #{ffn_forward.1} parent=1 // pred_fallthru
      _
    // Predicated region
    $region6: #{ffn_forward.1} parent=1 // pred_check
      _
    $region7: #{ffn_forward.1} parent=1 // pred_check_branch
      %16 = sbr.rel (0) target = $region9
    $region8: #{ffn_forward.1} parent=1 // pred_region
      %s18 = ssub.s32 1024, 1024
      %19 = vsyncadd [#allocation3], %s18
      %s20 = sshll.u32 [#allocation2], 4
      %s21 = int_to_ptr.vmem [resolvable:$true] %s20
      %26 = dma.hbm_to_vmem [thread:$0]  %s1, 1024, %s21, [#allocation3], 64, 64, 4
    $region9: #{ffn_forward.1} parent=1 // pred_fallthru
      _
    // Predicated region
    $region10: #{ffn_forward.1} parent=1 // pred_check
      _
    $region11: #{ffn_forward.1} parent=1 // pred_check_branch
      %28 = sbr.rel (0) target = $region13
    $region12: #{ffn_forward.1} parent=1 // pred_region
      _
    $region13: #{ffn_forward.1} parent=1 // pred_fallthru
      _
    // Predicated region
    $region14: #{ffn_forward.1} parent=1 // pred_check
      _
    $region15: #{ffn_forward.1} parent=1 // pred_check_branch
      %30 = sbr.rel (0) target = $region17
    $region16: #{ffn_forward.1} parent=1 // pred_region
      %s32 = ssub.s32 1024, 1024
      %33 = vsyncadd [#allocation6], %s32
      %s34 = sshll.u32 [#allocation5], 4
      %s35 = int_to_ptr.vmem [resolvable:$true] %s34
      %40 = dma.hbm_to_vmem [thread:$0]  %s3, 1024, %s35, [#allocation6], 64, 64, 4
    $region17: #{ffn_forward.1} parent=1 // pred_fallthru
      _
    // Predicated region
    $region18: #{ffn_forward.1} parent=1 // pred_check
      _
    $region19: #{ffn_forward.1} parent=1 // pred_check_branch
      %42 = sbr.rel (0) target = $region21
    $region20: #{ffn_forward.1} parent=1 // pred_region
      _
    $region21: #{ffn_forward.1} parent=1 // pred_fallthru
      _
    // Predicated region
    $region22: #{ffn_forward.1} parent=1 // pred_check
      _
    $region23: #{ffn_forward.1} parent=1 // pred_check_branch
      %44 = sbr.rel (0) target = $region25
    $region24: #{ffn_forward.1} parent=1 // pred_region
      %45 = dma.done [#allocation3], 1024
    $region25: #{ffn_forward.1} parent=1 // pred_fallthru
      _
    // Predicated region
    $region26: #{ffn_forward.1} parent=1 // pred_check
      _
    $region27: #{ffn_forward.1} parent=1 // pred_check_branch
      %47 = sbr.rel (0) target = $region29
    $region28: #{ffn_forward.1} parent=1 // pred_region
      %48 = dma.done [#allocation6], 1024
    $region29: #{ffn_forward.1} parent=1 // pred_fallthru
      _
    %v50 = vld [vmem:[%s0] sm:$0xf]
    %v51 = vld [vmem:[#allocation2] sm:$0xf]
    %v52 = vld [vmem:[#allocation2 + $0x4] sm:$0xf]
    %v53 = vld [vmem:[#allocation2 + $0x8] sm:$0xf]
    %v54 = vld [vmem:[#allocation2 + $0xc] sm:$0xf]
    %v55 = vld [vmem:[#allocation2 + $0x10] sm:$0xf]
    %v56 = vld [vmem:[#allocation2 + $0x14] sm:$0xf]
    %v57 = vld [vmem:[#allocation2 + $0x18] sm:$0xf]
    %v58 = vld [vmem:[#allocation2 + $0x1c] sm:$0xf]
    %v59 = vld [vmem:[#allocation2 + $0x20] sm:$0xf]
    %v60 = vld [vmem:[#allocation2 + $0x24] sm:$0xf]
    %v61 = vld [vmem:[#allocation2 + $0x28] sm:$0xf]
    %v62 = vld [vmem:[#allocation2 + $0x2c] sm:$0xf]
    %v63 = vld [vmem:[#allocation2 + $0x30] sm:$0xf]
    %v64 = vld [vmem:[#allocation2 + $0x34] sm:$0xf]
    %v65 = vld [vmem:[#allocation2 + $0x38] sm:$0xf]
    %v66 = vld [vmem:[#allocation2 + $0x3c] sm:$0xf]
    %v67 = vld [vmem:[%s2] sm:$0x1]
    %v69 = vlaneseq
    %v70 = vshrl.u32 %v69, 7
    %v71 = vsub.s32 0, %v70
    %v72 = vrot.slane %v67, %v71
    %v90 = vunpack.c.l.b16 %v51
    %v91 = vunpack.c.l.b16 %v52
    %v92 = vunpack.c.l.b16 %v53
    %v93 = vunpack.c.l.b16 %v54
    %v94 = vunpack.c.l.b16 %v55
    %v95 = vunpack.c.l.b16 %v56
    %v96 = vunpack.c.l.b16 %v57
    %v97 = vunpack.c.l.b16 %v58
    %v98 = vunpack.c.l.b16 %v59
    %v99 = vunpack.c.l.b16 %v60
    %v100 = vunpack.c.l.b16 %v61
    %v101 = vunpack.c.l.b16 %v62
    %v102 = vunpack.c.l.b16 %v63
    %v103 = vunpack.c.l.b16 %v64
    %v104 = vunpack.c.l.b16 %v65
    %v105 = vunpack.c.l.b16 %v66
    %v106 = vpack.c.b16 %v91, %v90
    %v107 = vpack.c.b16 %v93, %v92
    %v108 = vpack.c.b16 %v95, %v94
    %v109 = vpack.c.b16 %v97, %v96
    %v110 = vpack.c.b16 %v99, %v98
    %v111 = vpack.c.b16 %v101, %v100
    %v112 = vpack.c.b16 %v103, %v102
    %v113 = vpack.c.b16 %v105, %v104
    %122 = vmatprep.subr.bf16.mxu0 0
    %123 = vmatpush1.bf16.msra.mxu0 %v106
    %124 = vmatprep.subr.bf16.mxu0 0
    %125 = vmatpush1.bf16.msra.mxu0 %v107
    %126 = vmatprep.subr.bf16.mxu0 0
    %127 = vmatpush1.bf16.msra.mxu0 %v108
    %128 = vmatprep.subr.bf16.mxu0 0
    %129 = vmatpush1.bf16.msra.mxu0 %v109
    %130 = vmatprep.subr.bf16.mxu0 0
    %131 = vmatpush1.bf16.msra.mxu0 %v110
    %132 = vmatprep.subr.bf16.mxu0 0
    %133 = vmatpush1.bf16.msra.mxu0 %v111
    %134 = vmatprep.subr.bf16.mxu0 0
    %135 = vmatpush1.bf16.msra.mxu0 %v112
    %136 = vmatprep.subr.bf16.mxu0 0
    %137 = vmatpush1.bf16.msra.mxu0 %v113
    %138 = vmatprep.subr.bf16.mxu0 0
    %139 = vmatpush1.bf16.msra.mxu0 0
    %140 = vmatprep.subr.bf16.mxu0 0
    %141 = vmatpush1.bf16.msra.mxu0 0
    %142 = vmatprep.subr.bf16.mxu0 0
    %143 = vmatpush1.bf16.msra.mxu0 0
    %144 = vmatprep.subr.bf16.mxu0 0
    %145 = vmatpush1.bf16.msra.mxu0 0
    %146 = vmatprep.subr.bf16.mxu0 0
    %147 = vmatpush1.bf16.msra.mxu0 0
    %148 = vmatprep.subr.bf16.mxu0 0
    %149 = vmatpush1.bf16.msra.mxu0 0
    %150 = vmatprep.subr.bf16.mxu0 0
    %151 = vmatpush1.bf16.msra.mxu0 0
    %152 = vmatprep.subr.bf16.mxu0 0
    %153 = vmatpush1.bf16.msra.mxu0 0
    %154 = vmatprep.mubr.bf16.mxu0 0
    %155 = vmatmul.mubr.bf16.gmra.mrb[0].mxu0 %v50
    %v156 = vpop.f32.mrb[0].mxu0
    %v157 = vadd.f32 %v72, %v156
    %v158 = vpop.f32.mrb[0].mxu0
    %v159 = vpop.f32.mrb[0].mxu0
    %v160 = vpop.f32.mrb[0].mxu0
    %161 = vdwg.mxu0
    %v162 = vmax.f32 %v157, 0.0
    %v163 = vpack.c.bf16 %v162, %v162
    %v164 = vld [vmem:[#allocation5] sm:$0xf]
    %v165 = vld [vmem:[#allocation5 + $0x4] sm:$0xf]
    %v166 = vld [vmem:[#allocation5 + $0x8] sm:$0xf]
    %v167 = vld [vmem:[#allocation5 + $0xc] sm:$0xf]
    %v168 = vld [vmem:[#allocation5 + $0x10] sm:$0xf]
    %v169 = vld [vmem:[#allocation5 + $0x14] sm:$0xf]
    %v170 = vld [vmem:[#allocation5 + $0x18] sm:$0xf]
    %v171 = vld [vmem:[#allocation5 + $0x1c] sm:$0xf]
    %v172 = vld [vmem:[#allocation5 + $0x20] sm:$0xf]
    %v173 = vld [vmem:[#allocation5 + $0x24] sm:$0xf]
    %v174 = vld [vmem:[#allocation5 + $0x28] sm:$0xf]
    %v175 = vld [vmem:[#allocation5 + $0x2c] sm:$0xf]
    %v176 = vld [vmem:[#allocation5 + $0x30] sm:$0xf]
    %v177 = vld [vmem:[#allocation5 + $0x34] sm:$0xf]
    %v178 = vld [vmem:[#allocation5 + $0x38] sm:$0xf]
    %v179 = vld [vmem:[#allocation5 + $0x3c] sm:$0xf]
    %v180 = vld [vmem:[%s4] sm:$0x1]
    %v182 = vlaneseq
    %v183 = vshrl.u32 %v182, 7
    %v184 = vsub.s32 0, %v183
    %v185 = vrot.slane %v180, %v184
    %v203 = vunpack.c.l.b16 %v164
    %v204 = vunpack.c.l.b16 %v165
    %v205 = vunpack.c.l.b16 %v166
    %v206 = vunpack.c.l.b16 %v167
    %v207 = vunpack.c.l.b16 %v168
    %v208 = vunpack.c.l.b16 %v169
    %v209 = vunpack.c.l.b16 %v170
    %v210 = vunpack.c.l.b16 %v171
    %v211 = vunpack.c.l.b16 %v172
    %v212 = vunpack.c.l.b16 %v173
    %v213 = vunpack.c.l.b16 %v174
    %v214 = vunpack.c.l.b16 %v175
    %v215 = vunpack.c.l.b16 %v176
    %v216 = vunpack.c.l.b16 %v177
    %v217 = vunpack.c.l.b16 %v178
    %v218 = vunpack.c.l.b16 %v179
    %v219 = vpack.c.b16 %v204, %v203
    %v220 = vpack.c.b16 %v206, %v205
    %v221 = vpack.c.b16 %v208, %v207
    %v222 = vpack.c.b16 %v210, %v209
    %v223 = vpack.c.b16 %v212, %v211
    %v224 = vpack.c.b16 %v214, %v213
    %v225 = vpack.c.b16 %v216, %v215
    %v226 = vpack.c.b16 %v218, %v217
    %235 = vmatprep.subr.bf16.mxu0 0
    %236 = vmatpush1.bf16.msra.mxu0 %v219
    %237 = vmatprep.subr.bf16.mxu0 0
    %238 = vmatpush1.bf16.msra.mxu0 %v220
    %239 = vmatprep.subr.bf16.mxu0 0
    %240 = vmatpush1.bf16.msra.mxu0 %v221
    %241 = vmatprep.subr.bf16.mxu0 0
    %242 = vmatpush1.bf16.msra.mxu0 %v222
    %243 = vmatprep.subr.bf16.mxu0 0
    %244 = vmatpush1.bf16.msra.mxu0 %v223
    %245 = vmatprep.subr.bf16.mxu0 0
    %246 = vmatpush1.bf16.msra.mxu0 %v224
    %247 = vmatprep.subr.bf16.mxu0 0
    %248 = vmatpush1.bf16.msra.mxu0 %v225
    %249 = vmatprep.subr.bf16.mxu0 0
    %250 = vmatpush1.bf16.msra.mxu0 %v226
    %251 = vmatprep.subr.bf16.mxu0 0
    %252 = vmatpush1.bf16.msra.mxu0 0
    %253 = vmatprep.subr.bf16.mxu0 0
    %254 = vmatpush1.bf16.msra.mxu0 0
    %255 = vmatprep.subr.bf16.mxu0 0
    %256 = vmatpush1.bf16.msra.mxu0 0
    %257 = vmatprep.subr.bf16.mxu0 0
    %258 = vmatpush1.bf16.msra.mxu0 0
    %259 = vmatprep.subr.bf16.mxu0 0
    %260 = vmatpush1.bf16.msra.mxu0 0
    %261 = vmatprep.subr.bf16.mxu0 0
    %262 = vmatpush1.bf16.msra.mxu0 0
    %263 = vmatprep.subr.bf16.mxu0 0
    %264 = vmatpush1.bf16.msra.mxu0 0
    %265 = vmatprep.subr.bf16.mxu0 0
    %266 = vmatpush1.bf16.msra.mxu0 0
    %267 = vmatprep.mubr.bf16.mxu0 0
    %268 = vmatmul.mubr.bf16.gmra.mrb[0].mxu0 %v163
    %v269 = vpop.f32.mrb[0].mxu0
    %v270 = vadd.f32 %v185, %v269
    %v271 = vpop.f32.mrb[0].mxu0
    %v272 = vpop.f32.mrb[0].mxu0
    %v273 = vpop.f32.mrb[0].mxu0
    %274 = vdwg.mxu0
    %275 = vst [vmem:[#allocation7] sm:$0xff] %v270
    // Predicated region
    $region30: #{ffn_forward.1} parent=1 // pred_check
      _
    $region31: #{ffn_forward.1} parent=1 // pred_check_branch
      %277 = sbr.rel (0) target = $region33
    $region32: #{ffn_forward.1} parent=1 // pred_region
      %s279 = ssub.s32 128, 128
      %280 = vsyncadd [#allocation4], %s279
      %s282 = sshll.u32 [#allocation7], 4
      %s283 = int_to_ptr.vmem [resolvable:$true] %s282
      %285 = dma.vmem_to_hbm [thread:$0]  %s283, 128, %s5, [#allocation4]
    $region33: #{ffn_forward.1} parent=1 // pred_fallthru
      _
    // Predicated region
    $region34: #{ffn_forward.1} parent=1 // pred_check
      _
    $region35: #{ffn_forward.1} parent=1 // pred_check_branch
      %287 = sbr.rel (0) target = $region37
    $region36: #{ffn_forward.1} parent=1 // pred_region
      %288 = dma.done [#allocation4], 128
    $region37: #{ffn_forward.1} parent=1 // pred_fallthru
      _
    %289 = vsyncpa [#allocation3], 1
    %290 = vsyncpa [#allocation6], 1
    %291 = vsyncpa [#allocation4], 1

</llo_original>
